<compile_context>
chip_gen: v6e
topology: v6e:2x2x1
jax: 0.10.0
libtpu: 0.0.40
codegen_flags: <defaults>
</compile_context>

<pallas_src>
import jax
import jax.numpy as jnp
from jax import lax
from jax.experimental import pallas as pl
from jax.experimental.pallas import tpu as pltpu


def clip_classifier_kernel(x_ref, w1_ref, st1_ref, w2_ref, st2_ref,
                           w3_ref, b3_ref, o_ref):
    # x tile: (TB, 512) f32, streamed straight from HBM (no wrapper cast/pad pass).
    x = x_ref[...]

    # 1/||x||_2 per row in f32 (rsqrt -> EUP slot, effectively free).
    inv_norm = lax.rsqrt(jnp.sum(x * x, axis=-1, keepdims=True) + 1e-12)   # (TB, 1)

    # Linear(512,256) on un-normalized x; row scale folded into the epilogue:
    #   (x/||x||) @ W1 == (x @ W1) * (1/||x||)   (row-wise)
    xb = x.astype(jnp.bfloat16)
    h1 = jnp.dot(xb, w1_ref[...], preferred_element_type=jnp.float32)       # (TB, 256)
    h1 = h1 * (inv_norm * st1_ref[0:1, :]) + st1_ref[1:2, :]   # folded BN + bias + norm
    h1 = jnp.maximum(h1, 0.0).astype(jnp.bfloat16)             # ReLU (Dropout = identity)

    # Linear(256,128) + folded eval BatchNorm1d(128) + ReLU
    h2 = jnp.dot(h1, w2_ref[...], preferred_element_type=jnp.float32)       # (TB, 128)
    h2 = h2 * st2_ref[0:1, :] + st2_ref[1:2, :]
    h2 = jnp.maximum(h2, 0.0).astype(jnp.bfloat16)

    # Linear(128,90) zero-padded to 128 output lanes -> unmasked lane-dense stores.
    out = jnp.dot(h2, w3_ref[...], preferred_element_type=jnp.float32) + b3_ref[...]
    o_ref[...] = out.astype(o_ref.dtype)


def _choose_tile_b(B):
    """Balanced batch tiles: single tile for tiny B, else >=2 tiles of <=1024 rows."""
    if B <= 16:
        return max(8, ((B + 7) // 8) * 8)           # single tile, f32 sublane packing
    n_tiles = max(2, pl.cdiv(B, 1024))              # >=2 tiles: v7x megacore sharding
    return ((pl.cdiv(B, n_tiles) + 7) // 8) * 8     # balanced, rounded to 8 rows


def clip_classifier_forward(x, params, trim_output=True):
    """x: (B, 512) float32 image features.

    Returns (B, 90) f32 logits (module semantics). With trim_output=False, returns the
    padded (B_pad, 128) f32 logits and skips the post-kernel slice HBM pass (pad columns
    and rows are garbage-free but meaningless; real logits live in [:B, :90]).
    """
    B, D = x.shape
    eps = 1e-5
    n_cls = params["w3"].shape[1]
    n_cls_pad = ((n_cls + 127) // 128) * 128        # 90 -> 128 (lane-dense output)

    # Fold eval-mode BatchNorm1d into per-feature scale/shift; fold the preceding
    # Linear bias into the shift. Packed as (2, N): row 0 = scale, row 1 = shift.
    def fold_bn(bias, gamma, beta, running_mean, running_var):
        scale = gamma / jnp.sqrt(running_var + eps)
        shift = beta + (bias - running_mean) * scale
        return jnp.stack([scale, shift]).astype(jnp.float32)

    st1 = fold_bn(params["b1"], params["bn1_gamma"], params["bn1_beta"],
                  params["bn1_mean"], params["bn1_var"])              # (2, 256)
    st2 = fold_bn(params["b2"], params["bn2_gamma"], params["bn2_beta"],
                  params["bn2_mean"], params["bn2_var"])              # (2, 128)

    # Weights in bf16 (f32 accumulation in-kernel); final layer zero-padded to 128 lanes.
    w1 = params["w1"].astype(jnp.bfloat16)                            # (512, 256)
    w2 = params["w2"].astype(jnp.bfloat16)                            # (256, 128)
    w3 = jnp.zeros((params["w3"].shape[0], n_cls_pad), jnp.float32)
    w3 = w3.at[:, :n_cls].set(params["w3"]).astype(jnp.bfloat16)      # (128, 128)
    b3 = jnp.zeros((1, n_cls_pad), jnp.float32)
    b3 = b3.at[0, :n_cls].set(params["b3"])                           # (1, 128)

    # Batch tiling (x stays f32: no wrapper cast pass; pad only when ragged & small).
    tile_b = _choose_tile_b(B)
    n_tiles = pl.cdiv(B, tile_b)
    B_pad = n_tiles * tile_b
    x_p = x if B_pad == B else jnp.pad(x, ((0, B_pad - B), (0, 0)))

    flops = 2 * B_pad * (512 * 256 + 256 * 128 + 128 * n_cls_pad)
    bytes_accessed = (B_pad * D * 4                                    # x (f32 in)
                      + B_pad * n_cls_pad * 4                          # logits (f32 out)
                      + (512 * 256 + 256 * 128 + 128 * n_cls_pad) * 2  # weights bf16
                      + (2 * 256 + 2 * 128 + 2 * n_cls_pad) * 4)       # affine params
    cost = pl.CostEstimate(flops=flops, transcendentals=B_pad,
                           bytes_accessed=bytes_accessed)

    out = pl.pallas_call(
        clip_classifier_kernel,
        out_shape=jax.ShapeDtypeStruct((B_pad, n_cls_pad), jnp.float32),
        grid=(n_tiles,),
        in_specs=[
            pl.BlockSpec((tile_b, D), lambda i: (i, 0)),     # x: streamed per tile
            # Constant index_maps -> fetched once, VMEM-resident across the grid.
            pl.BlockSpec((512, 256), lambda i: (0, 0)),
            pl.BlockSpec((2, 256), lambda i: (0, 0)),
            pl.BlockSpec((256, 128), lambda i: (0, 0)),
            pl.BlockSpec((2, 128), lambda i: (0, 0)),
            pl.BlockSpec((128, n_cls_pad), lambda i: (0, 0)),
            pl.BlockSpec((1, n_cls_pad), lambda i: (0, 0)),
        ],
        out_specs=pl.BlockSpec((tile_b, n_cls_pad), lambda i: (i, 0)),
        compiler_params=pltpu.CompilerParams(
            dimension_semantics=("parallel",)),              # megacore sharding on v7x
        cost_estimate=cost,
    )(x_p, w1, st1, w2, st2, w3, b3)

    if not trim_output:
        return out
    return out[:B, :n_cls]


def init_params(key):
    """Deterministic parameter init matching the module's layer shapes."""
    ks = jax.random.split(key, 6)

    def linear(k, fan_in, fan_out):
        bound = 1.0 / jnp.sqrt(fan_in)
        kw, kb = jax.random.split(k)
        w = jax.random.uniform(kw, (fan_in, fan_out), jnp.float32, -bound, bound)
        b = jax.random.uniform(kb, (fan_out,), jnp.float32, -bound, bound)
        return w, b

    w1, b1 = linear(ks[0], 512, 256)
    w2, b2 = linear(ks[1], 256, 128)
    w3, b3 = linear(ks[2], 128, 90)

    return {
        "w1": w1, "b1": b1,
        "bn1_gamma": jnp.ones((256,), jnp.float32),
        "bn1_beta": jnp.zeros((256,), jnp.float32),
        "bn1_mean": jnp.zeros((256,), jnp.float32),
        "bn1_var": jnp.ones((256,), jnp.float32),
        "w2": w2, "b2": b2,
        "bn2_gamma": jnp.ones((128,), jnp.float32),
        "bn2_beta": jnp.zeros((128,), jnp.float32),
        "bn2_mean": jnp.zeros((128,), jnp.float32),
        "bn2_var": jnp.ones((128,), jnp.float32),
        "w3": w3, "b3": b3,
        # logit_scale exists as a parameter but is unused in forward()
        "logit_scale": jnp.ones((), jnp.float32),
    }


def reference_forward(x, params):
    """Pure-JAX f32 reference of the classifier head (eval mode)."""
    eps = 1e-5
    xn = x / jnp.linalg.norm(x, axis=-1, keepdims=True)
    h = xn @ params["w1"] + params["b1"]
    h = (h - params["bn1_mean"]) / jnp.sqrt(params["bn1_var"] + eps)
    h = h * params["bn1_gamma"] + params["bn1_beta"]
    h = jnp.maximum(h, 0.0)
    h = h @ params["w2"] + params["b2"]
    h = (h - params["bn2_mean"]) / jnp.sqrt(params["bn2_var"] + eps)
    h = h * params["bn2_gamma"] + params["bn2_beta"]
    h = jnp.maximum(h, 0.0)
    return h @ params["w3"] + params["b3"]


if __name__ == "__main__":
    key = jax.random.PRNGKey(0)
    k_params, k_x = jax.random.split(key)

    B = 8  # small batch; rows map to sublanes
    params = init_params(k_params)
    # Synthetic "CLIP image features" (stand-in for clip_model.encode_image output)
    x = jax.random.normal(k_x, (B, 512), dtype=jnp.float32)

    logits = clip_classifier_forward(x, params)
    logits = jax.block_until_ready(logits)

    ref = reference_forward(x, params)
    assert logits.shape == (B, 90), logits.shape
    max_err = float(jnp.max(jnp.abs(logits - ref)))
    # bf16 weight/activation path vs f32 reference: small absolute error expected
    assert max_err < 3e-2, max_err

    print("KERNEL_OK")
</pallas_src>

<mosaic_0001>
module attributes {stable_mosaic.version = 11 : i64} {
  func.func @clip_classifier_kernel(%arg0: i32, %arg1: memref<8x512xf32, #tpu.memory_space<vmem>>, %arg2: memref<512x256xbf16, #tpu.memory_space<vmem>>, %arg3: memref<2x256xf32, #tpu.memory_space<vmem>>, %arg4: memref<256x128xbf16, #tpu.memory_space<vmem>>, %arg5: memref<2x128xf32, #tpu.memory_space<vmem>>, %arg6: memref<128x128xbf16, #tpu.memory_space<vmem>>, %arg7: memref<1x128xf32, #tpu.memory_space<vmem>>, %arg8: memref<8x128xf32, #tpu.memory_space<vmem>>) attributes {dimension_semantics = [#tpu.dimension_semantics<parallel>], iteration_bounds = array<i64: 1>, scalar_prefetch = 0 : i64, scratch_operands = 0 : i64, tpu.core_type = #tpu.core_type<tc>, window_params = [{transform_indices = @transform_0, window_bounds = array<i64: 8, 512>}, {pipeline_mode = #tpu.pipeline_mode<synchronous>, transform_indices = @transform_1, window_bounds = array<i64: 512, 256>}, {pipeline_mode = #tpu.pipeline_mode<synchronous>, transform_indices = @transform_2, window_bounds = array<i64: 2, 256>}, {pipeline_mode = #tpu.pipeline_mode<synchronous>, transform_indices = @transform_3, window_bounds = array<i64: 256, 128>}, {pipeline_mode = #tpu.pipeline_mode<synchronous>, transform_indices = @transform_4, window_bounds = array<i64: 2, 128>}, {pipeline_mode = #tpu.pipeline_mode<synchronous>, transform_indices = @transform_5, window_bounds = array<i64: 128, 128>}, {pipeline_mode = #tpu.pipeline_mode<synchronous>, transform_indices = @transform_6, window_bounds = array<i64: 1, 128>}, {transform_indices = @transform_7, window_bounds = array<i64: 8, 128>}]} {
    %c0 = arith.constant 0 : index
    %c0_0 = arith.constant 0 : index
    %0 = vector.load %arg1[%c0, %c0_0] : memref<8x512xf32, #tpu.memory_space<vmem>>, vector<8x512xf32>
    %1 = arith.mulf %0, %0 : vector<8x512xf32>
    %cst = arith.constant dense<0.000000e+00> : vector<8xf32>
    %2 = vector.multi_reduction <add>, %1, %cst [1] : vector<8x512xf32> to vector<8xf32>
    %3 = vector.shape_cast %2 : vector<8xf32> to vector<8x1xf32>
    %cst_1 = arith.constant 9.99999996E-13 : f32
    %4 = vector.broadcast %cst_1 : f32 to vector<8x1xf32>
    %5 = arith.addf %3, %4 : vector<8x1xf32>
    %6 = math.rsqrt %5 : vector<8x1xf32>
    %7 = arith.truncf %0 : vector<8x512xf32> to vector<8x512xbf16>
    %c0_2 = arith.constant 0 : index
    %c0_3 = arith.constant 0 : index
    %8 = vector.load %arg2[%c0_2, %c0_3] : memref<512x256xbf16, #tpu.memory_space<vmem>>, vector<512x256xbf16>
    %cst_4 = arith.constant dense<0.000000e+00> : vector<8x256xf32>
    %9 = tpu.matmul %7, %8, %cst_4 {dimension_numbers = #tpu.dot_dimension_numbers<[1], [0], [0], [1], [0, 0, 1, 1], [], []>} : vector<8x512xbf16>, vector<512x256xbf16>, vector<8x256xf32> -> vector<8x256xf32>
    %c0_5 = arith.constant 0 : index
    %c0_6 = arith.constant 0 : index
    %10 = vector.load %arg3[%c0_5, %c0_6] : memref<2x256xf32, #tpu.memory_space<vmem>>, vector<1x256xf32>
    %11 = vector.broadcast %6 : vector<8x1xf32> to vector<8x256xf32>
    %12 = vector.broadcast %10 : vector<1x256xf32> to vector<8x256xf32>
    %13 = arith.mulf %11, %12 : vector<8x256xf32>
    %14 = arith.mulf %9, %13 : vector<8x256xf32>
    %c1 = arith.constant 1 : index
    %c0_7 = arith.constant 0 : index
    %15 = vector.load %arg3[%c1, %c0_7] : memref<2x256xf32, #tpu.memory_space<vmem>>, vector<1x256xf32>
    %16 = vector.broadcast %15 : vector<1x256xf32> to vector<8x256xf32>
    %17 = arith.addf %14, %16 : vector<8x256xf32>
    %cst_8 = arith.constant 0.000000e+00 : f32
    %18 = vector.broadcast %cst_8 : f32 to vector<8x256xf32>
    %19 = arith.maximumf %17, %18 : vector<8x256xf32>
    %20 = arith.truncf %19 : vector<8x256xf32> to vector<8x256xbf16>
    %c0_9 = arith.constant 0 : index
    %c0_10 = arith.constant 0 : index
    %21 = vector.load %arg4[%c0_9, %c0_10] : memref<256x128xbf16, #tpu.memory_space<vmem>>, vector<256x128xbf16>
    %cst_11 = arith.constant dense<0.000000e+00> : vector<8x128xf32>
    %22 = tpu.matmul %20, %21, %cst_11 {dimension_numbers = #tpu.dot_dimension_numbers<[1], [0], [0], [1], [0, 0, 1, 1], [], []>} : vector<8x256xbf16>, vector<256x128xbf16>, vector<8x128xf32> -> vector<8x128xf32>
    %c0_12 = arith.constant 0 : index
    %c0_13 = arith.constant 0 : index
    %23 = vector.load %arg5[%c0_12, %c0_13] : memref<2x128xf32, #tpu.memory_space<vmem>>, vector<1x128xf32>
    %24 = vector.broadcast %23 : vector<1x128xf32> to vector<8x128xf32>
    %25 = arith.mulf %22, %24 : vector<8x128xf32>
    %c1_14 = arith.constant 1 : index
    %c0_15 = arith.constant 0 : index
    %26 = vector.load %arg5[%c1_14, %c0_15] : memref<2x128xf32, #tpu.memory_space<vmem>>, vector<1x128xf32>
    %27 = vector.broadcast %26 : vector<1x128xf32> to vector<8x128xf32>
    %28 = arith.addf %25, %27 : vector<8x128xf32>
    %cst_16 = arith.constant 0.000000e+00 : f32
    %29 = vector.broadcast %cst_16 : f32 to vector<8x128xf32>
    %30 = arith.maximumf %28, %29 : vector<8x128xf32>
    %31 = arith.truncf %30 : vector<8x128xf32> to vector<8x128xbf16>
    %c0_17 = arith.constant 0 : index
    %c0_18 = arith.constant 0 : index
    %32 = vector.load %arg6[%c0_17, %c0_18] : memref<128x128xbf16, #tpu.memory_space<vmem>>, vector<128x128xbf16>
    %cst_19 = arith.constant dense<0.000000e+00> : vector<8x128xf32>
    %33 = tpu.matmul %31, %32, %cst_19 {dimension_numbers = #tpu.dot_dimension_numbers<[1], [0], [0], [1], [0, 0, 1, 1], [], []>} : vector<8x128xbf16>, vector<128x128xbf16>, vector<8x128xf32> -> vector<8x128xf32>
    %c0_20 = arith.constant 0 : index
    %c0_21 = arith.constant 0 : index
    %34 = vector.load %arg7[%c0_20, %c0_21] : memref<1x128xf32, #tpu.memory_space<vmem>>, vector<1x128xf32>
    %35 = vector.broadcast %34 : vector<1x128xf32> to vector<8x128xf32>
    %36 = arith.addf %33, %35 : vector<8x128xf32>
    %c0_22 = arith.constant 0 : index
    %c0_23 = arith.constant 0 : index
    %37 = vector.load %arg8[%c0_22, %c0_23] : memref<8x128xf32, #tpu.memory_space<vmem>>, vector<8x128xf32>
    tpu.vector_store %arg8[%c0_22, %c0_23], %36 {strides = array<i32>} : memref<8x128xf32, #tpu.memory_space<vmem>>, vector<8x128xf32>,
    return
  }
  func.func @transform_0(%arg0: i32) -> (i32, i32) {
    %c0_i32 = arith.constant 0 : i32
    %c0_i32_0 = arith.constant 0 : i32
    return %arg0, %c0_i32 : i32, i32
  }
  func.func @transform_1(%arg0: i32) -> (i32, i32) {
    %c0_i32 = arith.constant 0 : i32
    %c0_i32_0 = arith.constant 0 : i32
    %c0_i32_1 = arith.constant 0 : i32
    return %c0_i32, %c0_i32_0 : i32, i32
  }
  func.func @transform_2(%arg0: i32) -> (i32, i32) {
    %c0_i32 = arith.constant 0 : i32
    %c0_i32_0 = arith.constant 0 : i32
    %c0_i32_1 = arith.constant 0 : i32
    return %c0_i32, %c0_i32_0 : i32, i32
  }
  func.func @transform_3(%arg0: i32) -> (i32, i32) {
    %c0_i32 = arith.constant 0 : i32
    %c0_i32_0 = arith.constant 0 : i32
    %c0_i32_1 = arith.constant 0 : i32
    return %c0_i32, %c0_i32_0 : i32, i32
  }
  func.func @transform_4(%arg0: i32) -> (i32, i32) {
    %c0_i32 = arith.constant 0 : i32
    %c0_i32_0 = arith.constant 0 : i32
    %c0_i32_1 = arith.constant 0 : i32
    return %c0_i32, %c0_i32_0 : i32, i32
  }
  func.func @transform_5(%arg0: i32) -> (i32, i32) {
    %c0_i32 = arith.constant 0 : i32
    %c0_i32_0 = arith.constant 0 : i32
    %c0_i32_1 = arith.constant 0 : i32
    return %c0_i32, %c0_i32_0 : i32, i32
  }
  func.func @transform_6(%arg0: i32) -> (i32, i32) {
    %c0_i32 = arith.constant 0 : i32
    %c0_i32_0 = arith.constant 0 : i32
    %c0_i32_1 = arith.constant 0 : i32
    return %c0_i32, %c0_i32_0 : i32, i32
  }
  func.func @transform_7(%arg0: i32) -> (i32, i32) {
    %c0_i32 = arith.constant 0 : i32
    %c0_i32_0 = arith.constant 0 : i32
    return %arg0, %c0_i32 : i32, i32
  }
}

</mosaic_0001>

<llo_original>
// kernel: tpu_custom_call.1
$region0: #{tpu_custom_call.1}
  #allocation0 [shape = 'u32[]', space=smem, size = 0x4, offset = 0x4, fixed_abs, tag = 'smem constant byte address 0x4 - core index']
  #allocation1 [shape = 'u32[144,128]{1,0:T(1,128)}', space=vmem, size = 0x12000, scoped, tag = 'internal scratch']
  %s0 = inlined_call_operand.hbm [shape: f32[8,512], index: 0, kind: input, shape index: {}]
  %s1 = inlined_call_operand.hbm [shape: bf16[512,256], index: 1, kind: input, shape index: {}]
  %s2 = inlined_call_operand.hbm [shape: f32[2,256], index: 2, kind: input, shape index: {}]
  %s3 = inlined_call_operand.hbm [shape: bf16[256,128], index: 3, kind: input, shape index: {}]
  %s4 = inlined_call_operand.vmem [shape: f32[2,128], index: 4, kind: input, shape index: {}]
  %s5 = inlined_call_operand.hbm [shape: bf16[128,128], index: 5, kind: input, shape index: {}]
  %s6 = inlined_call_operand.vmem [shape: f32[1,128], index: 6, kind: input, shape index: {}]
  %s7 = inlined_call_operand.hbm [shape: f32[8,128], index: 7, kind: output, shape index: {}]
  %s8 = sld [smem:[#allocation0]]
  $region58: #{tpu_custom_call.1} parent=0
    _
  %s10 = ssub.s32 1, %s8
  %s11 = scalar_select 0, %s10, %s8
  $region1: #{tpu_custom_call.1} parent=0
    #allocation2 [shape = 'u8[16384]{0}', space=vmem, size = 0x4000, scoped, tag = 'input window, operand 0, single buffered']
    #allocation3 [shape = 's32[1]{0}', space=sflag, size = 0x4, scoped, tag = 'scoped memory for tpu_custom_call.1']
    #allocation4 [shape = 's32[1]{0}', space=sflag, size = 0x4, scoped, tag = 'scoped memory for tpu_custom_call.1']
    #allocation5 [shape = 'u8[262144]{0}', space=vmem, size = 0x40000, scoped, tag = 'input window, operand 1, single buffered']
    #allocation6 [shape = 's32[1]{0}', space=sflag, size = 0x4, scoped, tag = 'scoped memory for tpu_custom_call.1']
    #allocation7 [shape = 'u8[2048]{0}', space=vmem, size = 0x800, scoped, tag = 'input window, operand 2, single buffered']
    #allocation8 [shape = 'u8[65536]{0}', space=vmem, size = 0x10000, scoped, tag = 'input window, operand 3, single buffered']
    #allocation9 [shape = 's32[1]{0}', space=sflag, size = 0x4, scoped, tag = 'scoped memory for tpu_custom_call.1']
    #allocation10 [shape = 'u8[32768]{0}', space=vmem, size = 0x8000, scoped, tag = 'input window, operand 5, single buffered']
    #allocation11 [shape = 'u8[4096]{0}', space=vmem, size = 0x1000, scoped, tag = 'output window, operand 0, single buffered']
    %12 = vsyncpa [#allocation3], 0
    %13 = vsyncpa [#allocation6], 0
    %14 = vsyncpa [#allocation9], 0
    %15 = vsyncpa [#allocation4], 0
    // Predicated region
    $region2: #{tpu_custom_call.1} parent=1 // pred_check
      _
    $region3: #{tpu_custom_call.1} parent=1 // pred_check_branch
      %17 = sbr.rel (0) target = $region5
    $region4: #{tpu_custom_call.1} parent=1 // pred_region
      %s19 = ssub.s32 512, 512
      %20 = vsyncadd [#allocation3], %s19
      %s22 = sshll.u32 [#allocation2], 4
      %s23 = int_to_ptr.vmem [resolvable:$true] %s22
      %25 = dma.hbm_to_vmem [thread:$0]  %s0, 512, %s23, [#allocation3]
    $region5: #{tpu_custom_call.1} parent=1 // pred_fallthru
      _
    // Predicated region
    $region6: #{tpu_custom_call.1} parent=1 // pred_check
      _
    $region7: #{tpu_custom_call.1} parent=1 // pred_check_branch
      %27 = sbr.rel (0) target = $region9
    $region8: #{tpu_custom_call.1} parent=1 // pred_region
      %s29 = ssub.s32 8192, 8192
      %30 = vsyncadd [#allocation6], %s29
      %s31 = sshll.u32 [#allocation5], 4
      %s32 = int_to_ptr.vmem [resolvable:$true] %s31
      %37 = dma.hbm_to_vmem [thread:$0]  %s1, 8192, %s32, [#allocation6], 128, 128, 8
    $region9: #{tpu_custom_call.1} parent=1 // pred_fallthru
      _
    // Predicated region
    $region10: #{tpu_custom_call.1} parent=1 // pred_check
      _
    $region11: #{tpu_custom_call.1} parent=1 // pred_check_branch
      %39 = sbr.rel (0) target = $region13
    $region12: #{tpu_custom_call.1} parent=1 // pred_region
      %s41 = ssub.s32 64, 64
      %42 = vsyncadd [#allocation6], %s41
      %s44 = sshll.u32 [#allocation7], 4
      %s45 = int_to_ptr.vmem [resolvable:$true] %s44
      %47 = dma.hbm_to_vmem [thread:$0]  %s2, 64, %s45, [#allocation6]
    $region13: #{tpu_custom_call.1} parent=1 // pred_fallthru
      _
    // Predicated region
    $region14: #{tpu_custom_call.1} parent=1 // pred_check
      _
    $region15: #{tpu_custom_call.1} parent=1 // pred_check_branch
      %49 = sbr.rel (0) target = $region17
    $region16: #{tpu_custom_call.1} parent=1 // pred_region
      %s51 = ssub.s32 2048, 2048
      %52 = vsyncadd [#allocation9], %s51
      %s53 = sshll.u32 [#allocation8], 4
      %s54 = int_to_ptr.vmem [resolvable:$true] %s53
      %59 = dma.hbm_to_vmem [thread:$0]  %s3, 2048, %s54, [#allocation9], 64, 64, 4
    $region17: #{tpu_custom_call.1} parent=1 // pred_fallthru
      _
    // Predicated region
    $region18: #{tpu_custom_call.1} parent=1 // pred_check
      _
    $region19: #{tpu_custom_call.1} parent=1 // pred_check_branch
      %61 = sbr.rel (0) target = $region21
    $region20: #{tpu_custom_call.1} parent=1 // pred_region
      _
    $region21: #{tpu_custom_call.1} parent=1 // pred_fallthru
      _
    // Predicated region
    $region22: #{tpu_custom_call.1} parent=1 // pred_check
      _
    $region23: #{tpu_custom_call.1} parent=1 // pred_check_branch
      %63 = sbr.rel (0) target = $region25
    $region24: #{tpu_custom_call.1} parent=1 // pred_region
      %s65 = ssub.s32 1024, 1024
      %66 = vsyncadd [#allocation9], %s65
      %s67 = sshll.u32 [#allocation10], 4
      %s68 = int_to_ptr.vmem [resolvable:$true] %s67
      %73 = dma.hbm_to_vmem [thread:$0]  %s5, 1024, %s68, [#allocation9], 64, 64, 4
    $region25: #{tpu_custom_call.1} parent=1 // pred_fallthru
      _
    // Predicated region
    $region26: #{tpu_custom_call.1} parent=1 // pred_check
      _
    $region27: #{tpu_custom_call.1} parent=1 // pred_check_branch
      %75 = sbr.rel (0) target = $region29
    $region28: #{tpu_custom_call.1} parent=1 // pred_region
      _
    $region29: #{tpu_custom_call.1} parent=1 // pred_fallthru
      _
    // Predicated region
    $region30: #{tpu_custom_call.1} parent=1 // pred_check
      _
    $region31: #{tpu_custom_call.1} parent=1 // pred_check_branch
      %77 = sbr.rel (0) target = $region33
    $region32: #{tpu_custom_call.1} parent=1 // pred_region
      %78 = dma.done [#allocation3], 512
    $region33: #{tpu_custom_call.1} parent=1 // pred_fallthru
      _
    // Predicated region
    $region34: #{tpu_custom_call.1} parent=1 // pred_check
      _
    $region35: #{tpu_custom_call.1} parent=1 // pred_check_branch
      %80 = sbr.rel (0) target = $region37
    $region36: #{tpu_custom_call.1} parent=1 // pred_region
      %81 = dma.done [#allocation6], 8192
    $region37: #{tpu_custom_call.1} parent=1 // pred_fallthru
      _
    // Predicated region
    $region38: #{tpu_custom_call.1} parent=1 // pred_check
      _
    $region39: #{tpu_custom_call.1} parent=1 // pred_check_branch
      %83 = sbr.rel (0) target = $region41
    $region40: #{tpu_custom_call.1} parent=1 // pred_region
      %84 = dma.done [#allocation6], 64
    $region41: #{tpu_custom_call.1} parent=1 // pred_fallthru
      _
    // Predicated region
    $region42: #{tpu_custom_call.1} parent=1 // pred_check
      _
    $region43: #{tpu_custom_call.1} parent=1 // pred_check_branch
      %86 = sbr.rel (0) target = $region45
    $region44: #{tpu_custom_call.1} parent=1 // pred_region
      %87 = dma.done [#allocation9], 2048
    $region45: #{tpu_custom_call.1} parent=1 // pred_fallthru
      _
    // Predicated region
    $region46: #{tpu_custom_call.1} parent=1 // pred_check
      _
    $region47: #{tpu_custom_call.1} parent=1 // pred_check_branch
      %89 = sbr.rel (0) target = $region49
    $region48: #{tpu_custom_call.1} parent=1 // pred_region
      %90 = dma.done [#allocation9], 1024
    $region49: #{tpu_custom_call.1} parent=1 // pred_fallthru
      _
    %v92 = vld [vmem:[#allocation2] sm:$0xff]
    %v93 = vld [vmem:[#allocation2 + $0x8] sm:$0xff]
    %v94 = vld [vmem:[#allocation2 + $0x10] sm:$0xff]
    %v95 = vld [vmem:[#allocation2 + $0x18] sm:$0xff]
    %v96 = vmul.f32 %v92, %v92
    %v97 = vmul.f32 %v93, %v93
    %v98 = vmul.f32 %v94, %v94
    %v99 = vmul.f32 %v95, %v95
    %v100 = vadd.f32 %v96, %v97
    %v101 = vadd.f32 %v100, %v98
    %v102 = vadd.f32 %v101, %v99
    %103 = vadd.xlane.f32.xlu0 %v102
    %v104 = vpop.xlane.xlu0 %103
    %v105 = vadd.f32 %v104, 1e-12
    %v106 = vrsqrt.pop %v105
    %v107 = vpack.c.bf16 %v92, %v92
    %v108 = vpack.c.bf16 %v93, %v93
    %v109 = vpack.c.bf16 %v94, %v94
    %v110 = vpack.c.bf16 %v95, %v95
    %v111 = vld [vmem:[#allocation5] sm:$0xff]
    %v112 = vld [vmem:[#allocation5 + $0x8] sm:$0xff]
    %v113 = vld [vmem:[#allocation5 + $0x10] sm:$0xff]
    %v114 = vld [vmem:[#allocation5 + $0x18] sm:$0xff]
    %v115 = vld [vmem:[#allocation5 + $0x20] sm:$0xff]
    %v116 = vld [vmem:[#allocation5 + $0x28] sm:$0xff]
    %v117 = vld [vmem:[#allocation5 + $0x30] sm:$0xff]
    %v118 = vld [vmem:[#allocation5 + $0x38] sm:$0xff]
    %v119 = vld [vmem:[#allocation5 + $0x40] sm:$0xff]
    %v120 = vld [vmem:[#allocation5 + $0x48] sm:$0xff]
    %v121 = vld [vmem:[#allocation5 + $0x50] sm:$0xff]
    %v122 = vld [vmem:[#allocation5 + $0x58] sm:$0xff]
    %v123 = vld [vmem:[#allocation5 + $0x60] sm:$0xff]
    %v124 = vld [vmem:[#allocation5 + $0x68] sm:$0xff]
    %v125 = vld [vmem:[#allocation5 + $0x70] sm:$0xff]
    %v126 = vld [vmem:[#allocation5 + $0x78] sm:$0xff]
    %v127 = vld [vmem:[#allocation5 + $0x80] sm:$0xff]
    %v128 = vld [vmem:[#allocation5 + $0x88] sm:$0xff]
    %v129 = vld [vmem:[#allocation5 + $0x90] sm:$0xff]
    %v130 = vld [vmem:[#allocation5 + $0x98] sm:$0xff]
    %v131 = vld [vmem:[#allocation5 + $0xa0] sm:$0xff]
    %v132 = vld [vmem:[#allocation5 + $0xa8] sm:$0xff]
    %v133 = vld [vmem:[#allocation5 + $0xb0] sm:$0xff]
    %v134 = vld [vmem:[#allocation5 + $0xb8] sm:$0xff]
    %v135 = vld [vmem:[#allocation5 + $0xc0] sm:$0xff]
    %v136 = vld [vmem:[#allocation5 + $0xc8] sm:$0xff]
    %v137 = vld [vmem:[#allocation5 + $0xd0] sm:$0xff]
    %v138 = vld [vmem:[#allocation5 + $0xd8] sm:$0xff]
    %v139 = vld [vmem:[#allocation5 + $0xe0] sm:$0xff]
    %v140 = vld [vmem:[#allocation5 + $0xe8] sm:$0xff]
    %v141 = vld [vmem:[#allocation5 + $0xf0] sm:$0xff]
    %v142 = vld [vmem:[#allocation5 + $0xf8] sm:$0xff]
    %v143 = vld [vmem:[#allocation5 + $0x100] sm:$0xff]
    %v144 = vld [vmem:[#allocation5 + $0x108] sm:$0xff]
    %v145 = vld [vmem:[#allocation5 + $0x110] sm:$0xff]
    %v146 = vld [vmem:[#allocation5 + $0x118] sm:$0xff]
    %v147 = vld [vmem:[#allocation5 + $0x120] sm:$0xff]
    %v148 = vld [vmem:[#allocation5 + $0x128] sm:$0xff]
    %v149 = vld [vmem:[#allocation5 + $0x130] sm:$0xff]
    %v150 = vld [vmem:[#allocation5 + $0x138] sm:$0xff]
    %v151 = vld [vmem:[#allocation5 + $0x140] sm:$0xff]
    %v152 = vld [vmem:[#allocation5 + $0x148] sm:$0xff]
    %v153 = vld [vmem:[#allocation5 + $0x150] sm:$0xff]
    %v154 = vld [vmem:[#allocation5 + $0x158] sm:$0xff]
    %v155 = vld [vmem:[#allocation5 + $0x160] sm:$0xff]
    %v156 = vld [vmem:[#allocation5 + $0x168] sm:$0xff]
    %v157 = vld [vmem:[#allocation5 + $0x170] sm:$0xff]
    %v158 = vld [vmem:[#allocation5 + $0x178] sm:$0xff]
    %v159 = vld [vmem:[#allocation5 + $0x180] sm:$0xff]
    %v160 = vld [vmem:[#allocation5 + $0x188] sm:$0xff]
    %v161 = vld [vmem:[#allocation5 + $0x190] sm:$0xff]
    %v162 = vld [vmem:[#allocation5 + $0x198] sm:$0xff]
    %v163 = vld [vmem:[#allocation5 + $0x1a0] sm:$0xff]
    %v164 = vld [vmem:[#allocation5 + $0x1a8] sm:$0xff]
    %v165 = vld [vmem:[#allocation5 + $0x1b0] sm:$0xff]
    %v166 = vld [vmem:[#allocation5 + $0x1b8] sm:$0xff]
    %v167 = vld [vmem:[#allocation5 + $0x1c0] sm:$0xff]
    %v168 = vld [vmem:[#allocation5 + $0x1c8] sm:$0xff]
    %v169 = vld [vmem:[#allocation5 + $0x1d0] sm:$0xff]
    %v170 = vld [vmem:[#allocation5 + $0x1d8] sm:$0xff]
    %v171 = vld [vmem:[#allocation5 + $0x1e0] sm:$0xff]
    %v172 = vld [vmem:[#allocation5 + $0x1e8] sm:$0xff]
    %v173 = vld [vmem:[#allocation5 + $0x1f0] sm:$0xff]
    %v174 = vld [vmem:[#allocation5 + $0x1f8] sm:$0xff]
    %v239 = vunpack.c.l.b16 %v111
    %v240 = vunpack.c.h.b16 %v111
    %v241 = vunpack.c.l.b16 %v112
    %v242 = vunpack.c.h.b16 %v112
    %v243 = vunpack.c.l.b16 %v113
    %v244 = vunpack.c.h.b16 %v113
    %v245 = vunpack.c.l.b16 %v114
    %v246 = vunpack.c.h.b16 %v114
    %v247 = vunpack.c.l.b16 %v115
    %v248 = vunpack.c.h.b16 %v115
    %v249 = vunpack.c.l.b16 %v116
    %v250 = vunpack.c.h.b16 %v116
    %v251 = vunpack.c.l.b16 %v117
    %v252 = vunpack.c.h.b16 %v117
    %v253 = vunpack.c.l.b16 %v118
    %v254 = vunpack.c.h.b16 %v118
    %v255 = vunpack.c.l.b16 %v119
    %v256 = vunpack.c.h.b16 %v119
    %v257 = vunpack.c.l.b16 %v120
    %v258 = vunpack.c.h.b16 %v120
    %v259 = vunpack.c.l.b16 %v121
    %v260 = vunpack.c.h.b16 %v121
    %v261 = vunpack.c.l.b16 %v122
    %v262 = vunpack.c.h.b16 %v122
    %v263 = vunpack.c.l.b16 %v123
    %v264 = vunpack.c.h.b16 %v123
    %v265 = vunpack.c.l.b16 %v124
    %v266 = vunpack.c.h.b16 %v124
    %v267 = vunpack.c.l.b16 %v125
    %v268 = vunpack.c.h.b16 %v125
    %v269 = vunpack.c.l.b16 %v126
    %v270 = vunpack.c.h.b16 %v126
    %v271 = vunpack.c.l.b16 %v127
    %v272 = vunpack.c.h.b16 %v127
    %v273 = vunpack.c.l.b16 %v128
    %v274 = vunpack.c.h.b16 %v128
    %v275 = vunpack.c.l.b16 %v129
    %v276 = vunpack.c.h.b16 %v129
    %v277 = vunpack.c.l.b16 %v130
    %v278 = vunpack.c.h.b16 %v130
    %v279 = vunpack.c.l.b16 %v131
    %v280 = vunpack.c.h.b16 %v131
    %v281 = vunpack.c.l.b16 %v132
    %v282 = vunpack.c.h.b16 %v132
    %v283 = vunpack.c.l.b16 %v133
    %v284 = vunpack.c.h.b16 %v133
    %v285 = vunpack.c.l.b16 %v134
    %v286 = vunpack.c.h.b16 %v134
    %v287 = vunpack.c.l.b16 %v135
    %v288 = vunpack.c.h.b16 %v135
    %v289 = vunpack.c.l.b16 %v136
    %v290 = vunpack.c.h.b16 %v136
    %v291 = vunpack.c.l.b16 %v137
    %v292 = vunpack.c.h.b16 %v137
    %v293 = vunpack.c.l.b16 %v138
    %v294 = vunpack.c.h.b16 %v138
    %v295 = vunpack.c.l.b16 %v139
    %v296 = vunpack.c.h.b16 %v139
    %v297 = vunpack.c.l.b16 %v140
    %v298 = vunpack.c.h.b16 %v140
    %v299 = vunpack.c.l.b16 %v141
    %v300 = vunpack.c.h.b16 %v141
    %v301 = vunpack.c.l.b16 %v142
    %v302 = vunpack.c.h.b16 %v142
    %v303 = vunpack.c.l.b16 %v143
    %v304 = vunpack.c.h.b16 %v143
    %v305 = vunpack.c.l.b16 %v144
    %v306 = vunpack.c.h.b16 %v144
    %v307 = vunpack.c.l.b16 %v145
    %v308 = vunpack.c.h.b16 %v145
    %v309 = vunpack.c.l.b16 %v146
    %v310 = vunpack.c.h.b16 %v146
    %v311 = vunpack.c.l.b16 %v147
    %v312 = vunpack.c.h.b16 %v147
    %v313 = vunpack.c.l.b16 %v148
    %v314 = vunpack.c.h.b16 %v148
    %v315 = vunpack.c.l.b16 %v149
    %v316 = vunpack.c.h.b16 %v149
    %v317 = vunpack.c.l.b16 %v150
    %v318 = vunpack.c.h.b16 %v150
    %v319 = vunpack.c.l.b16 %v151
    %v320 = vunpack.c.h.b16 %v151
    %v321 = vunpack.c.l.b16 %v152
    %v322 = vunpack.c.h.b16 %v152
    %v323 = vunpack.c.l.b16 %v153
    %v324 = vunpack.c.h.b16 %v153
    %v325 = vunpack.c.l.b16 %v154
    %v326 = vunpack.c.h.b16 %v154
    %v327 = vunpack.c.l.b16 %v155
    %v328 = vunpack.c.h.b16 %v155
    %v329 = vunpack.c.l.b16 %v156
    %v330 = vunpack.c.h.b16 %v156
    %v331 = vunpack.c.l.b16 %v157
    %v332 = vunpack.c.h.b16 %v157
    %v333 = vunpack.c.l.b16 %v158
    %v334 = vunpack.c.h.b16 %v158
    %v335 = vunpack.c.l.b16 %v159
    %v336 = vunpack.c.h.b16 %v159
    %v337 = vunpack.c.l.b16 %v160
    %v338 = vunpack.c.h.b16 %v160
    %v339 = vunpack.c.l.b16 %v161
    %v340 = vunpack.c.h.b16 %v161
    %v341 = vunpack.c.l.b16 %v162
    %v342 = vunpack.c.h.b16 %v162
    %v343 = vunpack.c.l.b16 %v163
    %v344 = vunpack.c.h.b16 %v163
    %v345 = vunpack.c.l.b16 %v164
    %v346 = vunpack.c.h.b16 %v164
    %v347 = vunpack.c.l.b16 %v165
    %v348 = vunpack.c.h.b16 %v165
    %v349 = vunpack.c.l.b16 %v166
    %v350 = vunpack.c.h.b16 %v166
    %v351 = vunpack.c.l.b16 %v167
    %v352 = vunpack.c.h.b16 %v167
    %v353 = vunpack.c.l.b16 %v168
    %v354 = vunpack.c.h.b16 %v168
    %v355 = vunpack.c.l.b16 %v169
    %v356 = vunpack.c.h.b16 %v169
    %v357 = vunpack.c.l.b16 %v170
    %v358 = vunpack.c.h.b16 %v170
    %v359 = vunpack.c.l.b16 %v171
    %v360 = vunpack.c.h.b16 %v171
    %v361 = vunpack.c.l.b16 %v172
    %v362 = vunpack.c.h.b16 %v172
    %v363 = vunpack.c.l.b16 %v173
    %v364 = vunpack.c.h.b16 %v173
    %v365 = vunpack.c.l.b16 %v174
    %v366 = vunpack.c.h.b16 %v174
    %v367 = vpack.c.b16 %v241, %v239
    %v368 = vpack.c.b16 %v242, %v240
    %v369 = vpack.c.b16 %v245, %v243
    %v370 = vpack.c.b16 %v246, %v244
    %v371 = vpack.c.b16 %v249, %v247
    %v372 = vpack.c.b16 %v250, %v248
    %v373 = vpack.c.b16 %v253, %v251
    %v374 = vpack.c.b16 %v254, %v252
    %v375 = vpack.c.b16 %v257, %v255
    %v376 = vpack.c.b16 %v258, %v256
    %v377 = vpack.c.b16 %v261, %v259
    %v378 = vpack.c.b16 %v262, %v260
    %v379 = vpack.c.b16 %v265, %v263
    %v380 = vpack.c.b16 %v266, %v264
    %v381 = vpack.c.b16 %v269, %v267
    %v382 = vpack.c.b16 %v270, %v268
    %v383 = vpack.c.b16 %v273, %v271
    %v384 = vpack.c.b16 %v274, %v272
    %v385 = vpack.c.b16 %v277, %v275
    %v386 = vpack.c.b16 %v278, %v276
    %v387 = vpack.c.b16 %v281, %v279
    %v388 = vpack.c.b16 %v282, %v280
    %v389 = vpack.c.b16 %v285, %v283
    %v390 = vpack.c.b16 %v286, %v284
    %v391 = vpack.c.b16 %v289, %v287
    %v392 = vpack.c.b16 %v290, %v288
    %v393 = vpack.c.b16 %v293, %v291
    %v394 = vpack.c.b16 %v294, %v292
    %v395 = vpack.c.b16 %v297, %v295
    %v396 = vpack.c.b16 %v298, %v296
    %v397 = vpack.c.b16 %v301, %v299
    %v398 = vpack.c.b16 %v302, %v300
    %v399 = vpack.c.b16 %v305, %v303
    %v400 = vpack.c.b16 %v306, %v304
    %v401 = vpack.c.b16 %v309, %v307
    %v402 = vpack.c.b16 %v310, %v308
    %v403 = vpack.c.b16 %v313, %v311
    %v404 = vpack.c.b16 %v314, %v312
    %v405 = vpack.c.b16 %v317, %v315
    %v406 = vpack.c.b16 %v318, %v316
    %v407 = vpack.c.b16 %v321, %v319
    %v408 = vpack.c.b16 %v322, %v320
    %v409 = vpack.c.b16 %v325, %v323
    %v410 = vpack.c.b16 %v326, %v324
    %v411 = vpack.c.b16 %v329, %v327
    %v412 = vpack.c.b16 %v330, %v328
    %v413 = vpack.c.b16 %v333, %v331
    %v414 = vpack.c.b16 %v334, %v332
    %v415 = vpack.c.b16 %v337, %v335
    %v416 = vpack.c.b16 %v338, %v336
    %v417 = vpack.c.b16 %v341, %v339
    %v418 = vpack.c.b16 %v342, %v340
    %v419 = vpack.c.b16 %v345, %v343
    %v420 = vpack.c.b16 %v346, %v344
    %v421 = vpack.c.b16 %v349, %v347
    %v422 = vpack.c.b16 %v350, %v348
    %v423 = vpack.c.b16 %v353, %v351
    %v424 = vpack.c.b16 %v354, %v352
    %v425 = vpack.c.b16 %v357, %v355
    %v426 = vpack.c.b16 %v358, %v356
    %v427 = vpack.c.b16 %v361, %v359
    %v428 = vpack.c.b16 %v362, %v360
    %v429 = vpack.c.b16 %v365, %v363
    %v430 = vpack.c.b16 %v366, %v364
    %495 = vmatprep.subr.bf16.mxu0 %v382
    %496 = vmatpush1.bf16.msra.mxu0 %v381
    %497 = vmatprep.subr.bf16.mxu0 %v380
    %498 = vmatpush1.bf16.msra.mxu0 %v379
    %499 = vmatprep.subr.bf16.mxu0 %v378
    %500 = vmatpush1.bf16.msra.mxu0 %v377
    %501 = vmatprep.subr.bf16.mxu0 %v376
    %502 = vmatpush1.bf16.msra.mxu0 %v375
    %503 = vmatprep.subr.bf16.mxu0 %v374
    %504 = vmatpush1.bf16.msra.mxu0 %v373
    %505 = vmatprep.subr.bf16.mxu0 %v372
    %506 = vmatpush1.bf16.msra.mxu0 %v371
    %507 = vmatprep.subr.bf16.mxu0 %v370
    %508 = vmatpush1.bf16.msra.mxu0 %v369
    %509 = vmatprep.subr.bf16.mxu0 %v368
    %510 = vmatpush1.bf16.msra.mxu0 %v367
    %511 = vmatprep.subr.bf16.mxu0 %v398
    %512 = vmatpush2.bf16.msra.mxu0 %v397
    %513 = vmatprep.subr.bf16.mxu0 %v396
    %514 = vmatpush2.bf16.msra.mxu0 %v395
    %515 = vmatprep.subr.bf16.mxu0 %v394
    %516 = vmatpush2.bf16.msra.mxu0 %v393
    %517 = vmatprep.subr.bf16.mxu0 %v392
    %518 = vmatpush2.bf16.msra.mxu0 %v391
    %519 = vmatprep.subr.bf16.mxu0 %v390
    %520 = vmatpush2.bf16.msra.mxu0 %v389
    %521 = vmatprep.subr.bf16.mxu0 %v388
    %522 = vmatpush2.bf16.msra.mxu0 %v387
    %523 = vmatprep.subr.bf16.mxu0 %v386
    %524 = vmatpush2.bf16.msra.mxu0 %v385
    %525 = vmatprep.subr.bf16.mxu0 %v384
    %526 = vmatpush2.bf16.msra.mxu0 %v383
    %527 = vmatprep.mubr.bf16.mxu0 %v108
    %528 = vmatmul.mubr.bf16.gmra.mxu0 %v107
    %v529 = vpop.f32.mrf.mxu0
    %v530 = vadd.f32 0.0, %v529
    %v531 = vpop.f32.mrf.mxu0
    %v532 = vadd.f32 0.0, %v531
    %v533 = vpop.f32.mrf.mxu0
    %v534 = vpop.f32.mrf.mxu0
    %535 = vdwg.mxu0
    %536 = vmatprep.subr.bf16.mxu0 %v414
    %537 = vmatpush1.bf16.msra.mxu0 %v413
    %538 = vmatprep.subr.bf16.mxu0 %v412
    %539 = vmatpush1.bf16.msra.mxu0 %v411
    %540 = vmatprep.subr.bf16.mxu0 %v410
    %541 = vmatpush1.bf16.msra.mxu0 %v409
    %542 = vmatprep.subr.bf16.mxu0 %v408
    %543 = vmatpush1.bf16.msra.mxu0 %v407
    %544 = vmatprep.subr.bf16.mxu0 %v406
    %545 = vmatpush1.bf16.msra.mxu0 %v405
    %546 = vmatprep.subr.bf16.mxu0 %v404
    %547 = vmatpush1.bf16.msra.mxu0 %v403
    %548 = vmatprep.subr.bf16.mxu0 %v402
    %549 = vmatpush1.bf16.msra.mxu0 %v401
    %550 = vmatprep.subr.bf16.mxu0 %v400
    %551 = vmatpush1.bf16.msra.mxu0 %v399
    %552 = vmatprep.subr.bf16.mxu0 %v430
    %553 = vmatpush2.bf16.msra.mxu0 %v429
    %554 = vmatprep.subr.bf16.mxu0 %v428
    %555 = vmatpush2.bf16.msra.mxu0 %v427
    %556 = vmatprep.subr.bf16.mxu0 %v426
    %557 = vmatpush2.bf16.msra.mxu0 %v425
    %558 = vmatprep.subr.bf16.mxu0 %v424
    %559 = vmatpush2.bf16.msra.mxu0 %v423
    %560 = vmatprep.subr.bf16.mxu0 %v422
    %561 = vmatpush2.bf16.msra.mxu0 %v421
    %562 = vmatprep.subr.bf16.mxu0 %v420
    %563 = vmatpush2.bf16.msra.mxu0 %v419
    %564 = vmatprep.subr.bf16.mxu0 %v418
    %565 = vmatpush2.bf16.msra.mxu0 %v417
    %566 = vmatprep.subr.bf16.mxu0 %v416
    %567 = vmatpush2.bf16.msra.mxu0 %v415
    %568 = vmatprep.mubr.bf16.mxu0 %v110
    %569 = vmatmul.mubr.bf16.gmra.mxu0 %v109
    %v570 = vpop.f32.mrf.mxu0
    %v571 = vadd.f32 %v530, %v570
    %v572 = vpop.f32.mrf.mxu0
    %v573 = vadd.f32 %v532, %v572
    %v574 = vpop.f32.mrf.mxu0
    %v575 = vpop.f32.mrf.mxu0
    %576 = vdwg.mxu0
    %v577 = vld [vmem:[#allocation7] ss:$2 sm:$0x3]
    %v579 = vlaneseq
    %v580 = vshrl.u32 %v579, 7
    %v581 = vsub.s32 0, %v580
    %v582 = vrot.slane %v577, %v581
    %v583 = vlaneseq
    %v584 = vshrl.u32 %v583, 7
    %v585 = vsub.s32 1, %v584
    %v586 = vrot.slane %v577, %v585
    %v589 = vmul.f32 %v106, %v582
    %v590 = vmul.f32 %v106, %v586
    %v591 = vmul.f32 %v571, %v589
    %v592 = vmul.f32 %v573, %v590
    %s593 = scalar_lea.vmem [#allocation7], 1
    %v594 = vld [vmem:[%s593] ss:$2 sm:$0x3]
    %v596 = vlaneseq
    %v597 = vshrl.u32 %v596, 7
    %v598 = vsub.s32 0, %v597
    %v599 = vrot.slane %v594, %v598
    %v600 = vlaneseq
    %v601 = vshrl.u32 %v600, 7
    %v602 = vsub.s32 1, %v601
    %v603 = vrot.slane %v594, %v602
    %v606 = vadd.f32 %v591, %v599
    %v607 = vadd.f32 %v592, %v603
    %v608 = vmax.f32 %v606, 0.0
    %v609 = vmax.f32 %v607, 0.0
    %v610 = vpack.c.bf16 %v608, %v608
    %v611 = vpack.c.bf16 %v609, %v609
    %v612 = vld [vmem:[#allocation8] sm:$0xf]
    %v613 = vld [vmem:[#allocation8 + $0x4] sm:$0xf]
    %v614 = vld [vmem:[#allocation8 + $0x8] sm:$0xf]
    %v615 = vld [vmem:[#allocation8 + $0xc] sm:$0xf]
    %v616 = vld [vmem:[#allocation8 + $0x10] sm:$0xf]
    %v617 = vld [vmem:[#allocation8 + $0x14] sm:$0xf]
    %v618 = vld [vmem:[#allocation8 + $0x18] sm:$0xf]
    %v619 = vld [vmem:[#allocation8 + $0x1c] sm:$0xf]
    %v620 = vld [vmem:[#allocation8 + $0x20] sm:$0xf]
    %v621 = vld [vmem:[#allocation8 + $0x24] sm:$0xf]
    %v622 = vld [vmem:[#allocation8 + $0x28] sm:$0xf]
    %v623 = vld [vmem:[#allocation8 + $0x2c] sm:$0xf]
    %v624 = vld [vmem:[#allocation8 + $0x30] sm:$0xf]
    %v625 = vld [vmem:[#allocation8 + $0x34] sm:$0xf]
    %v626 = vld [vmem:[#allocation8 + $0x38] sm:$0xf]
    %v627 = vld [vmem:[#allocation8 + $0x3c] sm:$0xf]
    %v628 = vld [vmem:[#allocation8 + $0x40] sm:$0xf]
    %v629 = vld [vmem:[#allocation8 + $0x44] sm:$0xf]
    %v630 = vld [vmem:[#allocation8 + $0x48] sm:$0xf]
    %v631 = vld [vmem:[#allocation8 + $0x4c] sm:$0xf]
    %v632 = vld [vmem:[#allocation8 + $0x50] sm:$0xf]
    %v633 = vld [vmem:[#allocation8 + $0x54] sm:$0xf]
    %v634 = vld [vmem:[#allocation8 + $0x58] sm:$0xf]
    %v635 = vld [vmem:[#allocation8 + $0x5c] sm:$0xf]
    %v636 = vld [vmem:[#allocation8 + $0x60] sm:$0xf]
    %v637 = vld [vmem:[#allocation8 + $0x64] sm:$0xf]
    %v638 = vld [vmem:[#allocation8 + $0x68] sm:$0xf]
    %v639 = vld [vmem:[#allocation8 + $0x6c] sm:$0xf]
    %v640 = vld [vmem:[#allocation8 + $0x70] sm:$0xf]
    %v641 = vld [vmem:[#allocation8 + $0x74] sm:$0xf]
    %v642 = vld [vmem:[#allocation8 + $0x78] sm:$0xf]
    %v643 = vld [vmem:[#allocation8 + $0x7c] sm:$0xf]
    %v676 = vunpack.c.l.b16 %v612
    %v677 = vunpack.c.l.b16 %v613
    %v678 = vunpack.c.l.b16 %v614
    %v679 = vunpack.c.l.b16 %v615
    %v680 = vunpack.c.l.b16 %v616
    %v681 = vunpack.c.l.b16 %v617
    %v682 = vunpack.c.l.b16 %v618
    %v683 = vunpack.c.l.b16 %v619
    %v684 = vunpack.c.l.b16 %v620
    %v685 = vunpack.c.l.b16 %v621
    %v686 = vunpack.c.l.b16 %v622
    %v687 = vunpack.c.l.b16 %v623
    %v688 = vunpack.c.l.b16 %v624
    %v689 = vunpack.c.l.b16 %v625
    %v690 = vunpack.c.l.b16 %v626
    %v691 = vunpack.c.l.b16 %v627
    %v692 = vunpack.c.l.b16 %v628
    %v693 = vunpack.c.l.b16 %v629
    %v694 = vunpack.c.l.b16 %v630
    %v695 = vunpack.c.l.b16 %v631
    %v696 = vunpack.c.l.b16 %v632
    %v697 = vunpack.c.l.b16 %v633
    %v698 = vunpack.c.l.b16 %v634
    %v699 = vunpack.c.l.b16 %v635
    %v700 = vunpack.c.l.b16 %v636
    %v701 = vunpack.c.l.b16 %v637
    %v702 = vunpack.c.l.b16 %v638
    %v703 = vunpack.c.l.b16 %v639
    %v704 = vunpack.c.l.b16 %v640
    %v705 = vunpack.c.l.b16 %v641
    %v706 = vunpack.c.l.b16 %v642
    %v707 = vunpack.c.l.b16 %v643
    %v708 = vpack.c.b16 %v677, %v676
    %v709 = vpack.c.b16 %v679, %v678
    %v710 = vpack.c.b16 %v681, %v680
    %v711 = vpack.c.b16 %v683, %v682
    %v712 = vpack.c.b16 %v685, %v684
    %v713 = vpack.c.b16 %v687, %v686
    %v714 = vpack.c.b16 %v689, %v688
    %v715 = vpack.c.b16 %v691, %v690
    %v716 = vpack.c.b16 %v693, %v692
    %v717 = vpack.c.b16 %v695, %v694
    %v718 = vpack.c.b16 %v697, %v696
    %v719 = vpack.c.b16 %v699, %v698
    %v720 = vpack.c.b16 %v701, %v700
    %v721 = vpack.c.b16 %v703, %v702
    %v722 = vpack.c.b16 %v705, %v704
    %v723 = vpack.c.b16 %v707, %v706
    %740 = vmatprep.subr.bf16.mxu0 0
    %741 = vmatpush1.bf16.msra.mxu0 %v715
    %742 = vmatprep.subr.bf16.mxu0 0
    %743 = vmatpush1.bf16.msra.mxu0 %v714
    %744 = vmatprep.subr.bf16.mxu0 0
    %745 = vmatpush1.bf16.msra.mxu0 %v713
    %746 = vmatprep.subr.bf16.mxu0 0
    %747 = vmatpush1.bf16.msra.mxu0 %v712
    %748 = vmatprep.subr.bf16.mxu0 0
    %749 = vmatpush1.bf16.msra.mxu0 %v711
    %750 = vmatprep.subr.bf16.mxu0 0
    %751 = vmatpush1.bf16.msra.mxu0 %v710
    %752 = vmatprep.subr.bf16.mxu0 0
    %753 = vmatpush1.bf16.msra.mxu0 %v709
    %754 = vmatprep.subr.bf16.mxu0 0
    %755 = vmatpush1.bf16.msra.mxu0 %v708
    %756 = vmatprep.subr.bf16.mxu0 0
    %757 = vmatpush2.bf16.msra.mxu0 %v723
    %758 = vmatprep.subr.bf16.mxu0 0
    %759 = vmatpush2.bf16.msra.mxu0 %v722
    %760 = vmatprep.subr.bf16.mxu0 0
    %761 = vmatpush2.bf16.msra.mxu0 %v721
    %762 = vmatprep.subr.bf16.mxu0 0
    %763 = vmatpush2.bf16.msra.mxu0 %v720
    %764 = vmatprep.subr.bf16.mxu0 0
    %765 = vmatpush2.bf16.msra.mxu0 %v719
    %766 = vmatprep.subr.bf16.mxu0 0
    %767 = vmatpush2.bf16.msra.mxu0 %v718
    %768 = vmatprep.subr.bf16.mxu0 0
    %769 = vmatpush2.bf16.msra.mxu0 %v717
    %770 = vmatprep.subr.bf16.mxu0 0
    %771 = vmatpush2.bf16.msra.mxu0 %v716
    %772 = vmatprep.mubr.bf16.mxu0 %v611
    %773 = vmatmul.mubr.bf16.gmra.mxu0 %v610
    %v774 = vpop.f32.mrf.mxu0
    %v775 = vadd.f32 0.0, %v774
    %v776 = vpop.f32.mrf.mxu0
    %v777 = vpop.f32.mrf.mxu0
    %v778 = vpop.f32.mrf.mxu0
    %779 = vdwg.mxu0
    %v780 = vld [vmem:[%s4] sm:$0x1]
    %v781 = vlaneseq
    %v782 = vshrl.u32 %v781, 7
    %v783 = vsub.s32 0, %v782
    %v784 = vrot.slane %v780, %v783
    %v785 = vmul.f32 %v775, %v784
    %v786 = vld [vmem:[%s4 + $0x1] sm:$0x1]
    %v787 = vlaneseq
    %v788 = vshrl.u32 %v787, 7
    %v789 = vsub.s32 0, %v788
    %v790 = vrot.slane %v786, %v789
    %v791 = vadd.f32 %v785, %v790
    %v792 = vmax.f32 %v791, 0.0
    %v793 = vpack.c.bf16 %v792, %v792
    %v794 = vld [vmem:[#allocation10] sm:$0xf]
    %v795 = vld [vmem:[#allocation10 + $0x4] sm:$0xf]
    %v796 = vld [vmem:[#allocation10 + $0x8] sm:$0xf]
    %v797 = vld [vmem:[#allocation10 + $0xc] sm:$0xf]
    %v798 = vld [vmem:[#allocation10 + $0x10] sm:$0xf]
    %v799 = vld [vmem:[#allocation10 + $0x14] sm:$0xf]
    %v800 = vld [vmem:[#allocation10 + $0x18] sm:$0xf]
    %v801 = vld [vmem:[#allocation10 + $0x1c] sm:$0xf]
    %v802 = vld [vmem:[#allocation10 + $0x20] sm:$0xf]
    %v803 = vld [vmem:[#allocation10 + $0x24] sm:$0xf]
    %v804 = vld [vmem:[#allocation10 + $0x28] sm:$0xf]
    %v805 = vld [vmem:[#allocation10 + $0x2c] sm:$0xf]
    %v806 = vld [vmem:[#allocation10 + $0x30] sm:$0xf]
    %v807 = vld [vmem:[#allocation10 + $0x34] sm:$0xf]
    %v808 = vld [vmem:[#allocation10 + $0x38] sm:$0xf]
    %v809 = vld [vmem:[#allocation10 + $0x3c] sm:$0xf]
    %v810 = vld [vmem:[%s6] sm:$0x1]
    %v812 = vlaneseq
    %v813 = vshrl.u32 %v812, 7
    %v814 = vsub.s32 0, %v813
    %v815 = vrot.slane %v810, %v814
    %v833 = vunpack.c.l.b16 %v794
    %v834 = vunpack.c.l.b16 %v795
    %v835 = vunpack.c.l.b16 %v796
    %v836 = vunpack.c.l.b16 %v797
    %v837 = vunpack.c.l.b16 %v798
    %v838 = vunpack.c.l.b16 %v799
    %v839 = vunpack.c.l.b16 %v800
    %v840 = vunpack.c.l.b16 %v801
    %v841 = vunpack.c.l.b16 %v802
    %v842 = vunpack.c.l.b16 %v803
    %v843 = vunpack.c.l.b16 %v804
    %v844 = vunpack.c.l.b16 %v805
    %v845 = vunpack.c.l.b16 %v806
    %v846 = vunpack.c.l.b16 %v807
    %v847 = vunpack.c.l.b16 %v808
    %v848 = vunpack.c.l.b16 %v809
    %v849 = vpack.c.b16 %v834, %v833
    %v850 = vpack.c.b16 %v836, %v835
    %v851 = vpack.c.b16 %v838, %v837
    %v852 = vpack.c.b16 %v840, %v839
    %v853 = vpack.c.b16 %v842, %v841
    %v854 = vpack.c.b16 %v844, %v843
    %v855 = vpack.c.b16 %v846, %v845
    %v856 = vpack.c.b16 %v848, %v847
    %865 = vmatprep.subr.bf16.mxu0 0
    %866 = vmatpush1.bf16.msra.mxu0 %v856
    %867 = vmatprep.subr.bf16.mxu0 0
    %868 = vmatpush1.bf16.msra.mxu0 %v855
    %869 = vmatprep.subr.bf16.mxu0 0
    %870 = vmatpush1.bf16.msra.mxu0 %v854
    %871 = vmatprep.subr.bf16.mxu0 0
    %872 = vmatpush1.bf16.msra.mxu0 %v853
    %873 = vmatprep.subr.bf16.mxu0 0
    %874 = vmatpush1.bf16.msra.mxu0 %v852
    %875 = vmatprep.subr.bf16.mxu0 0
    %876 = vmatpush1.bf16.msra.mxu0 %v851
    %877 = vmatprep.subr.bf16.mxu0 0
    %878 = vmatpush1.bf16.msra.mxu0 %v850
    %879 = vmatprep.subr.bf16.mxu0 0
    %880 = vmatpush1.bf16.msra.mxu0 %v849
    %881 = vmatprep.subr.bf16.mxu0 0
    %882 = vmatpush2.bf16.msra.mxu0 0
    %883 = vmatprep.subr.bf16.mxu0 0
    %884 = vmatpush2.bf16.msra.mxu0 0
    %885 = vmatprep.subr.bf16.mxu0 0
    %886 = vmatpush2.bf16.msra.mxu0 0
    %887 = vmatprep.subr.bf16.mxu0 0
    %888 = vmatpush2.bf16.msra.mxu0 0
    %889 = vmatprep.subr.bf16.mxu0 0
    %890 = vmatpush2.bf16.msra.mxu0 0
    %891 = vmatprep.subr.bf16.mxu0 0
    %892 = vmatpush2.bf16.msra.mxu0 0
    %893 = vmatprep.subr.bf16.mxu0 0
    %894 = vmatpush2.bf16.msra.mxu0 0
    %895 = vmatprep.subr.bf16.mxu0 0
    %896 = vmatpush2.bf16.msra.mxu0 0
    %897 = vmatprep.mubr.bf16.mxu0 0
    %898 = vmatmul.mubr.bf16.gmra.mxu0 %v793
    %v899 = vpop.f32.mrf.mxu0
    %v900 = vadd.f32 %v815, %v899
    %v901 = vpop.f32.mrf.mxu0
    %v902 = vpop.f32.mrf.mxu0
    %v903 = vpop.f32.mrf.mxu0
    %904 = vdwg.mxu0
    %905 = vst [vmem:[#allocation11] sm:$0xff] %v900
    // Predicated region
    $region50: #{tpu_custom_call.1} parent=1 // pred_check
      _
    $region51: #{tpu_custom_call.1} parent=1 // pred_check_branch
      %907 = sbr.rel (0) target = $region53
    $region52: #{tpu_custom_call.1} parent=1 // pred_region
      %s909 = ssub.s32 128, 128
      %910 = vsyncadd [#allocation4], %s909
      %s912 = sshll.u32 [#allocation11], 4
      %s913 = int_to_ptr.vmem [resolvable:$true] %s912
      %915 = dma.vmem_to_hbm [thread:$0]  %s913, 128, %s7, [#allocation4]
    $region53: #{tpu_custom_call.1} parent=1 // pred_fallthru
      _
    // Predicated region
    $region54: #{tpu_custom_call.1} parent=1 // pred_check
      _
    $region55: #{tpu_custom_call.1} parent=1 // pred_check_branch
      %917 = sbr.rel (0) target = $region57
    $region56: #{tpu_custom_call.1} parent=1 // pred_region
      %918 = dma.done [#allocation4], 128
    $region57: #{tpu_custom_call.1} parent=1 // pred_fallthru
      _
    %919 = vsyncpa [#allocation3], 1
    %920 = vsyncpa [#allocation6], 1
    %921 = vsyncpa [#allocation9], 1
    %922 = vsyncpa [#allocation4], 1

</llo_original>
